<compile_context>
chip_gen: v7x
topology: tpu7x:2x2x1
jax: 0.10.0
libtpu: 0.0.40
codegen_flags: <defaults>
</compile_context>

<pallas_src>
import functools
import math

import numpy as np
import jax
import jax.numpy as jnp
from jax import lax
from jax.experimental import pallas as pl
from jax.experimental.pallas import tpu as pltpu


# ----------------------------------------------------------------------------
# helpers
# ----------------------------------------------------------------------------
def _rup(v, m):
    return ((v + m - 1) // m) * m


def glorot(key, shape):
    fan_in, fan_out = shape[0], shape[-1]
    std = math.sqrt(2.0 / (fan_in + fan_out))
    return std * jax.random.normal(key, shape, jnp.float32)


def segment_sum(x, idx, num):
    return jax.ops.segment_sum(x, idx, num_segments=num)


def segment_softmax(x, idx, num):
    # torch_geometric.utils.softmax semantics (per-segment, numerically stable)
    m = jax.ops.segment_max(x, idx, num_segments=num)
    e = jnp.exp(x - m[idx])
    s = jax.ops.segment_sum(e, idx, num_segments=num)
    return e / (s[idx] + 1e-16)


def to_dense_batch(x, batch, num_graphs, max_nodes):
    n = x.shape[0]
    counts = jax.ops.segment_sum(jnp.ones((n,), jnp.int32), batch,
                                 num_segments=num_graphs)
    starts = jnp.concatenate(
        [jnp.zeros((1,), jnp.int32), jnp.cumsum(counts)[:-1]])
    pos = jnp.arange(n, dtype=jnp.int32) - starts[batch]
    dense = jnp.zeros((num_graphs, max_nodes, x.shape[1]), x.dtype)
    dense = dense.at[batch, pos].set(x)
    mask = jnp.zeros((num_graphs, max_nodes), bool).at[batch, pos].set(True)
    return dense, mask


def _full_specs(args):
    # full-array blocks (exempt from the (8,128) divisibility rule)
    return [pl.BlockSpec(a.shape, lambda i, nd=a.ndim: (0,) * nd) for a in args]


# ----------------------------------------------------------------------------
# Pallas kernel 1: fused linear (+ bias + activation)
# Single full block whenever it fits a small VMEM budget (always true at these
# shapes); >=128-row 8-aligned tiles + megacore semantics only as a fallback.
# ----------------------------------------------------------------------------
def _act(y, act):
    if act == "leaky_relu":
        return jnp.where(y >= 0, y, 0.01 * y)
    if act == "tanh":
        return jnp.tanh(y)
    return y


def _linear_bias_kernel(x_ref, w_ref, b_ref, o_ref, *, act):
    y = jnp.dot(x_ref[...], w_ref[...], preferred_element_type=jnp.float32)
    o_ref[...] = _act(y + b_ref[...], act)


def _linear_nobias_kernel(x_ref, w_ref, o_ref, *, act):
    y = jnp.dot(x_ref[...], w_ref[...], preferred_element_type=jnp.float32)
    o_ref[...] = _act(y, act)


def _vmem_bytes(tm, K, N):
    # double-buffered f32 footprint of one grid step
    return 2 * 4 * (tm * K + K * N + tm * N)


def _pick_tm(M, K, N, budget=4 * 1024 * 1024):
    if _vmem_bytes(M, K, N) <= budget:
        return M                      # one full block: zero per-step overhead
    tm = max(128, _rup(pl.cdiv(M, 2), 8))   # megacore-friendly >=128-row tiles
    while tm > 128 and _vmem_bytes(tm, K, N) > budget:
        tm = max(128, _rup(tm // 2, 8))
    return tm


def pallas_linear(x, w, b=None, act="none"):
    """(M, K) @ (K, N) [+ b(1, N)] with optional activation.

    Weights are stored (in, out) = transpose of torch nn.Linear.weight.
    """
    M, K = x.shape
    N = w.shape[1]
    tm = _pick_tm(M, K, N)
    grid = (pl.cdiv(M, tm),)
    cparams = (pltpu.CompilerParams(dimension_semantics=("parallel",))
               if grid[0] > 1 else None)
    x_spec = pl.BlockSpec((tm, K), lambda i: (i, 0))
    w_spec = pl.BlockSpec((K, N), lambda i: (0, 0))
    o_spec = pl.BlockSpec((tm, N), lambda i: (i, 0))
    out_shape = jax.ShapeDtypeStruct((M, N), jnp.float32)
    if b is None:
        return pl.pallas_call(
            functools.partial(_linear_nobias_kernel, act=act),
            out_shape=out_shape, grid=grid,
            in_specs=[x_spec, w_spec], out_specs=o_spec,
            compiler_params=cparams)(x, w)
    return pl.pallas_call(
        functools.partial(_linear_bias_kernel, act=act),
        out_shape=out_shape, grid=grid,
        in_specs=[x_spec, w_spec, pl.BlockSpec((1, N), lambda i: (0, 0))],
        out_specs=o_spec,
        compiler_params=cparams)(x, w, b)


# ----------------------------------------------------------------------------
# Pallas kernel 2: DMPNN node projection -- mlp (LeakyReLU) -> lin_u/lin_v
# fused into one launch; emits both x_in and the 128-wide uv slab.
# ----------------------------------------------------------------------------
def _dmpnn_node_kernel(x_ref, w1_ref, b1_ref, wuv_ref, xin_ref, uv_ref):
    h = jnp.dot(x_ref[...], w1_ref[...],
                preferred_element_type=jnp.float32) + b1_ref[...]
    h = jnp.where(h >= 0, h, 0.01 * h)
    xin_ref[...] = h
    uv_ref[...] = jnp.dot(h, wuv_ref[...], preferred_element_type=jnp.float32)


def dmpnn_node_proj(dp, x):
    M = x.shape[0]
    ddm = dp['mlp_w'].shape[1]
    args = (x, dp['mlp_w'], dp['mlp_b'], dp['lin_uv_w'])
    return pl.pallas_call(
        _dmpnn_node_kernel,
        out_shape=(jax.ShapeDtypeStruct((M, ddm), jnp.float32),
                   jax.ShapeDtypeStruct((M, 2 * ddm), jnp.float32)),
        grid=(1,),
        in_specs=_full_specs(args),
        out_specs=(pl.BlockSpec((M, ddm), lambda i: (0, 0)),
                   pl.BlockSpec((M, 2 * ddm), lambda i: (0, 0))),
    )(*args)


# ----------------------------------------------------------------------------
# Pallas kernel 3: mutual attention -- whole batch in one grid step.
# Batch is folded into MXU rows for every hidden-dim-deep matmul; only the
# tiny (L,N) cross terms are per-batch-element.
# ----------------------------------------------------------------------------
def _mutual_attention_kernel(x_ref, t_ref, wb_ref, wx_ref, wp_ref,
                             whx_ref, whp_ref, c_ref, p_ref):
    B, N, Dd = x_ref.shape
    _, L, Dp = t_ref.shape
    xd = x_ref[...]                               # (B, N, Dd)
    tg = t_ref[...]                               # (B, L, Dp)
    xd2 = xd.reshape(B * N, Dd)
    tg2 = tg.reshape(B * L, Dp)

    # hidden-dim-deep matmuls, batch folded into MXU rows (lane-dense)
    U = jnp.dot(tg2, wb_ref[...],
                preferred_element_type=jnp.float32).reshape(B, L, Dd)
    Xw = jnp.einsum('md,kd->mk', xd2, wx_ref[...],
                    preferred_element_type=jnp.float32).reshape(B, N, -1)
    Pw = jnp.einsum('md,kd->mk', tg2, wp_ref[...],
                    preferred_element_type=jnp.float32).reshape(B, L, -1)

    # tiny per-element cross terms
    C = jnp.tanh(jnp.einsum('bld,bnd->bln', U, xd,
                            preferred_element_type=jnp.float32))   # (B, L, N)
    HcT = jnp.tanh(Xw + jnp.einsum('bln,blk->bnk', C, Pw,
                                   preferred_element_type=jnp.float32))
    HpT = jnp.tanh(Pw + jnp.einsum('bln,bnk->blk', C, Xw,
                                   preferred_element_type=jnp.float32))

    # attention logits + softmax (reciprocal on the EUP path)
    ac = jnp.sum(HcT * whx_ref[...], axis=-1)     # (B, N)
    ap = jnp.sum(HpT * whp_ref[...], axis=-1)     # (B, L)
    ac = jnp.exp(ac - jnp.max(ac, axis=-1, keepdims=True))
    ac = ac * pl.reciprocal(jnp.sum(ac, axis=-1, keepdims=True), approx=True)
    ap = jnp.exp(ap - jnp.max(ap, axis=-1, keepdims=True))
    ap = ap * pl.reciprocal(jnp.sum(ap, axis=-1, keepdims=True), approx=True)

    c_ref[...] = jnp.sum(ac[:, :, None] * xd, axis=1)   # (B, Dd)
    p_ref[...] = jnp.sum(ap[:, :, None] * tg, axis=1)   # (B, Dp)


def mutual_attention(params, x_dense, target):
    B, N, Dd = x_dense.shape
    _, L, Dp = target.shape
    args = (x_dense, target, params['W_b'], params['W_x'], params['W_p'],
            params['w_hx_row'], params['w_hp_row'])
    return pl.pallas_call(
        _mutual_attention_kernel,
        out_shape=(jax.ShapeDtypeStruct((B, Dd), jnp.float32),
                   jax.ShapeDtypeStruct((B, Dp), jnp.float32)),
        grid=(1,),
        in_specs=_full_specs(args),
        out_specs=(pl.BlockSpec((B, Dd), lambda i: (0, 0)),
                   pl.BlockSpec((B, Dp), lambda i: (0, 0))),
    )(*args)


# ----------------------------------------------------------------------------
# Pallas kernel 4: fully-fused (simplified) Mamba block.
# in_proj -> causal depthwise conv (shift-matrix matmuls) -> SiLU -> x_proj ->
# selective scan -> gating -> out_proj, all in one launch; state stays on-chip.
# TODO(synk): simplified Mamba2 (single-group selective scan, no chunked SSD /
#             multi-head layout) -- the real Mamba2 comes from mamba_ssm.
# ----------------------------------------------------------------------------
def _mamba_kernel(u_ref, inw_ref, convw_ref, convb_ref, shift_ref,
                  xpw_ref, dtb_ref, Alog_ref, D_ref, outw_ref,
                  o_ref, gated_s, *, d_inner, d_state, d_conv):
    B, L, Dm = u_ref.shape
    u2 = u_ref[...].reshape(B * L, Dm)
    zx = jnp.dot(u2, inw_ref[...], preferred_element_type=jnp.float32)
    z2 = zx[:, :d_inner]
    xc2 = zx[:, d_inner:]

    # causal depthwise conv: sum_s (shift_s @ xc) * tap_{d_conv-1-s} + bias
    cw = convw_ref[...]                                   # (d_conv, d_inner)
    acc = jnp.zeros((B * L, d_inner), jnp.float32)
    for s in range(d_conv):
        shifted = jnp.dot(shift_ref[s], xc2, preferred_element_type=jnp.float32)
        acc = acc + shifted * cw[d_conv - 1 - s]
    xconv2 = acc + convb_ref[...]
    xconv2 = xconv2 * jax.nn.sigmoid(xconv2)              # SiLU

    # dt / B / C projection (batched over all B*L rows)
    dbc = jnp.dot(xconv2, xpw_ref[...], preferred_element_type=jnp.float32)
    dt2 = jax.nn.softplus(dbc[:, :d_inner] + dtb_ref[...])
    Bm2 = dbc[:, d_inner:d_inner + d_state]
    Cm2 = dbc[:, d_inner + d_state:]

    A1 = -jnp.exp(Alog_ref[0])                            # (d_inner,)
    D1 = D_ref[0]                                         # (d_inner,)

    # selective scan, fully unrolled at these tiny B/L; state lives in
    # vregs / compiler-managed VMEM.
    # TODO(synk): for long L, switch to an L-blocked fori_loop over time-major
    #             VMEM scratch (state remains VMEM-resident either way).
    for b in range(B):
        xs_b = xconv2[b * L:(b + 1) * L, :]
        dt_b = dt2[b * L:(b + 1) * L, :]
        Bm_b = Bm2[b * L:(b + 1) * L, :]
        Cm_b = Cm2[b * L:(b + 1) * L, :]
        z_b = z2[b * L:(b + 1) * L, :]
        h = jnp.zeros((d_inner, d_state), jnp.float32)
        for t in range(L):
            x_t, dt_t = xs_b[t], dt_b[t]
            B_t, C_t, z_t = Bm_b[t], Cm_b[t], z_b[t]
            dA = jnp.exp(dt_t * A1)
            h = h * dA[:, None] + (dt_t * x_t)[:, None] * B_t[None, :]
            y_t = jnp.sum(h * C_t[None, :], axis=-1)
            gated_s[b * L + t, :] = (y_t + D1 * x_t) * (z_t * jax.nn.sigmoid(z_t))

    # out_proj, batched over all rows
    o_ref[...] = jnp.dot(gated_s[...], outw_ref[...],
                         preferred_element_type=jnp.float32).reshape(B, L, Dm)


def mamba_fused(mp, u):
    B, L, Dm = u.shape
    d_inner, d_state, d_conv = mp['d_inner'], mp['d_state'], mp['d_conv']
    # host-precomputed per-tap causal shift operators (block-diagonal over B)
    sm = np.zeros((d_conv, B * L, B * L), np.float32)
    for s in range(d_conv):
        for b in range(B):
            for t in range(s, L):
                sm[s, b * L + t, b * L + t - s] = 1.0
    shift_mats = jnp.asarray(sm)
    args = (u, mp['in_proj_w'], mp['conv_w'], mp['conv_b'], shift_mats,
            mp['x_proj_w'], mp['dt_bias'], mp['A_log'], mp['D'],
            mp['out_proj_w'])
    return pl.pallas_call(
        functools.partial(_mamba_kernel, d_inner=d_inner,
                          d_state=d_state, d_conv=d_conv),
        out_shape=jax.ShapeDtypeStruct((B, L, Dm), jnp.float32),
        grid=(1,),
        in_specs=_full_specs(args),
        out_specs=pl.BlockSpec((B, L, Dm), lambda i: (0, 0, 0)),
        scratch_shapes=[pltpu.VMEM((B * L, d_inner), jnp.float32)],
    )(*args)


# ----------------------------------------------------------------------------
# Pallas kernel 5: fused MLP_combined head.  Concats the four feature pieces
# in-kernel, then LN -> Lin -> LeakyReLU -> LN -> Lin -> LeakyReLU -> Lin.
# Dropouts are eval-mode identities.
# ----------------------------------------------------------------------------
def _mlp_combined_kernel(xm_ref, dr_ref, tm_ref, pr_ref, ln1w, ln1b, w1, b1,
                         ln2w, ln2b, w2, b2, w3, b3, o_ref, *, eps1, eps2):
    x = jnp.concatenate([xm_ref[...], dr_ref[...], tm_ref[...], pr_ref[...]],
                        axis=-1)
    mu = jnp.mean(x, axis=-1, keepdims=True)
    var = jnp.mean((x - mu) ** 2, axis=-1, keepdims=True)
    h = (x - mu) / jnp.sqrt(var + eps1) * ln1w[...] + ln1b[...]
    h = jnp.dot(h, w1[...], preferred_element_type=jnp.float32) + b1[...]
    h = jnp.where(h >= 0, h, 0.01 * h)
    mu = jnp.mean(h, axis=-1, keepdims=True)
    var = jnp.mean((h - mu) ** 2, axis=-1, keepdims=True)
    h = (h - mu) / jnp.sqrt(var + eps2) * ln2w[...] + ln2b[...]
    h = jnp.dot(h, w2[...], preferred_element_type=jnp.float32) + b2[...]
    h = jnp.where(h >= 0, h, 0.01 * h)
    o_ref[...] = jnp.dot(h, w3[...], preferred_element_type=jnp.float32) + b3[...]


def mlp_combined(cp, x_mean, durg, tmamba_mean, protein):
    # TODO(synk): lane-1 output -> masked vst; emit a 128-wide slab + slice in
    #             the wrapper if this ever runs at real batch sizes.
    M = x_mean.shape[0]
    args = (x_mean, durg, tmamba_mean, protein,
            cp['ln1_w'], cp['ln1_b'], cp['w1'], cp['b1'],
            cp['ln2_w'], cp['ln2_b'], cp['w2'], cp['b2'], cp['w3'], cp['b3'])
    return pl.pallas_call(
        functools.partial(_mlp_combined_kernel,
                          eps1=cp['eps1'], eps2=cp['eps2']),
        out_shape=jax.ShapeDtypeStruct((M, 1), jnp.float32),
        grid=(1,),
        in_specs=_full_specs(args),
        out_specs=pl.BlockSpec((M, 1), lambda i: (0, 0)),
    )(*args)


# ----------------------------------------------------------------------------
# DMPNN (graph scatters left as XLA glue; dense matmuls via Pallas)
# ----------------------------------------------------------------------------
def dmpnn_forward(dp, x, edge_index, edge_attr, lg_ei, edge_batch,
                  num_graphs, n_iter=3):
    ddm = dp['mlp_w'].shape[1]

    x_in, uv = dmpnn_node_proj(dp, x)          # fused mlp -> lin_u/lin_v
    edge_u, edge_v = uv[:, :ddm], uv[:, ddm:]
    edge_uv = pallas_linear(edge_attr, dp['lin_edge_w'])
    edge_feat = (edge_u[edge_index[0]] + edge_v[edge_index[1]]
                 + edge_uv) * (1.0 / 3.0)
    E = edge_feat.shape[0]

    att = dp['att']
    out = edge_feat
    out_list, gout_list = [], []
    for _ in range(n_iter):
        out = segment_sum(out[lg_ei[0]], lg_ei[1], E)
        out = edge_feat + out
        # GlobalAttentionPool: GraphConv(hidden, 1, aggr='add') ==
        #   lin_rel(sum_j out_j) + lin_root(out_i).  N=1 projections are pure
        #   VPU reductions -> leave to XLA (no wasted N=1 MXU passes).
        agg = segment_sum(out[lg_ei[0]], lg_ei[1], E)
        x_conv = (jnp.einsum('ef,f->e', agg, att['rel_w']) + att['rel_b']
                  + jnp.einsum('ef,f->e', out, att['root_w']))[:, None]
        scores = segment_softmax(x_conv, edge_batch, num_graphs)
        gout_list.append(segment_sum(out * scores, edge_batch, num_graphs))
        out_list.append(out)

    # lin_gout hoisted out of the loop: single (n_iter*G, ddm) tanh linear
    gout_lin = pallas_linear(jnp.concatenate(gout_list, axis=0),
                             dp['lin_gout_w'], dp['lin_gout_b'], act='tanh')
    gout_all = jnp.stack(jnp.split(gout_lin, n_iter, axis=0), axis=-1)  # (G,F,T)
    out_all = jnp.stack(out_list, axis=-1)                              # (E,F,T)

    scores = jnp.einsum('gft,f->gt', gout_all, dp['w']) * dp['scale']
    scores = jax.nn.softmax(scores, axis=-1)
    scores_e = scores[edge_batch]              # == repeat_interleave(degree)
    out = jnp.einsum('eft,et->ef', out_all, scores_e)
    return x_in + segment_sum(out, edge_index[1], x_in.shape[0])


# ----------------------------------------------------------------------------
# full MutualDTA forward
# ----------------------------------------------------------------------------
BETA_P, BETA_X = 0.5, 0.99


def mutual_dta_forward(params, graphs, proteins):
    num_graphs, max_nodes = graphs['num_graphs'], graphs['max_nodes']

    x_nodes = pallas_linear(graphs['x'], params['mlp_before_w'],
                            params['mlp_before_b'], act='leaky_relu')
    x_dense, _ = to_dense_batch(x_nodes, graphs['batch'],
                                num_graphs, max_nodes)
    # F.dropout1d(..., training=False) -> identity

    drug_enc = dmpnn_forward(params['dmpnn'], x_nodes, graphs['edge_index'],
                             graphs['edge_attr'], graphs['lg_edge_index'],
                             graphs['edge_batch'], num_graphs)
    after = pallas_linear(drug_enc, params['mlp_after_w'],
                          params['mlp_after_b'], act='leaky_relu')
    drug_enc = (1.0 - BETA_X) * after + BETA_X * x_nodes
    drug_dense, _ = to_dense_batch(drug_enc, graphs['batch'],
                                   num_graphs, max_nodes)

    B, L, _ = proteins.shape
    target = pallas_linear(proteins.reshape(B * L, -1),
                           params['mlp_protein_w'],
                           params['mlp_protein_b']).reshape(B, L, -1)
    target_mamba = ((1.0 - BETA_P) * mamba_fused(params['mamba'], target)
                    + BETA_P * target)

    durg, protein = mutual_attention(params, drug_dense, target)
    # x_dense.mean(1) includes zero padding / max_nodes divisor: matches torch.
    return mlp_combined(params['combined'], x_dense.mean(1), durg,
                        target_mamba.mean(1), protein)


# ----------------------------------------------------------------------------
# deterministic parameter initialization (synthetic, no checkpoint)
# weights stored (in, out); biases stored (1, out).
# ----------------------------------------------------------------------------
def init_params(key):
    keys = iter(jax.random.split(key, 64))
    nk = lambda: next(keys)
    D_DRUG_IN, D_PROT_IN, D_EDGE = 64, 64, 6
    # protein hidden raised to 128 -> lane-dense W_b / Pw / p (perf review)
    DH_DRUG, DH_PROT, DDM, K_ATT = 128, 128, 64, 64

    P = {
        'mlp_before_w': glorot(nk(), (D_DRUG_IN, DH_DRUG)),
        'mlp_before_b': jnp.zeros((1, DH_DRUG)),
        'mlp_after_w': glorot(nk(), (DDM, DH_DRUG)),
        'mlp_after_b': jnp.zeros((1, DH_DRUG)),
        'mlp_protein_w': glorot(nk(), (D_PROT_IN, DH_PROT)),
        'mlp_protein_b': jnp.zeros((1, DH_PROT)),
        'W_b': glorot(nk(), (DH_PROT, DH_DRUG)),
        'W_x': glorot(nk(), (K_ATT, DH_DRUG)),
        'W_p': glorot(nk(), (K_ATT, DH_PROT)),
        # w_hx / w_hp stored as (1, k) rows (lane-dense in the attention kernel)
        'w_hx_row': glorot(nk(), (K_ATT, 1)).reshape(1, K_ATT),
        'w_hp_row': glorot(nk(), (K_ATT, 1)).reshape(1, K_ATT),
    }
    P['dmpnn'] = {
        'mlp_w': glorot(nk(), (DH_DRUG, DDM)), 'mlp_b': jnp.zeros((1, DDM)),
        # lin_u / lin_v pre-fused once into a (DDM, 2*DDM) weight
        'lin_uv_w': jnp.concatenate([glorot(nk(), (DDM, DDM)),
                                     glorot(nk(), (DDM, DDM))], axis=1),
        'lin_edge_w': glorot(nk(), (D_EDGE, DDM)),
        'lin_gout_w': glorot(nk(), (DDM, DDM)),
        'lin_gout_b': jnp.zeros((1, DDM)),
        'w': glorot(nk(), (DDM, 1))[:, 0],
        'scale': DDM ** (-0.5),
        'att': {'rel_w': glorot(nk(), (DDM, 1))[:, 0],
                'rel_b': jnp.zeros(()),
                'root_w': glorot(nk(), (DDM, 1))[:, 0]},
    }
    d_model, d_state, d_conv = DH_PROT, 64, 4
    d_inner = 2 * d_model
    P['mamba'] = {
        'd_inner': d_inner, 'd_state': d_state, 'd_conv': d_conv,
        'in_proj_w': glorot(nk(), (d_model, 2 * d_inner)),
        'conv_w': 0.1 * jax.random.normal(nk(), (d_conv, d_inner), jnp.float32),
        'conv_b': jnp.zeros((1, d_inner)),
        'x_proj_w': glorot(nk(), (d_inner, d_inner + 2 * d_state)),
        'dt_bias': jnp.zeros((1, d_inner)),
        'A_log': jnp.log(jnp.arange(1, d_inner + 1,
                                    dtype=jnp.float32)).reshape(1, d_inner),
        'D': jnp.ones((1, d_inner)),
        'out_proj_w': glorot(nk(), (d_inner, d_model)),
    }
    DCAT = 2 * DH_DRUG + 2 * DH_PROT   # 512
    P['combined'] = {
        'ln1_w': jnp.ones((1, DCAT)), 'ln1_b': jnp.zeros((1, DCAT)),
        'w1': glorot(nk(), (DCAT, DCAT)), 'b1': jnp.zeros((1, DCAT)),
        'ln2_w': jnp.ones((1, DCAT)), 'ln2_b': jnp.zeros((1, DCAT)),
        'w2': glorot(nk(), (DCAT, DH_DRUG)), 'b2': jnp.zeros((1, DH_DRUG)),
        'w3': glorot(nk(), (DH_DRUG, 1)), 'b3': jnp.zeros((1, 1)),
        # torch nn.LayerNorm(D, D): second positional arg is eps -> eps1 = D.
        # Intentional bug-for-bug reproduction of the reference model.
        'eps1': float(DCAT),
        'eps2': 1e-5,
    }
    return P


# ----------------------------------------------------------------------------
# main
# ----------------------------------------------------------------------------
if __name__ == "__main__":
    key = jax.random.PRNGKey(0)
    pkey, dkey = jax.random.split(key)
    params = init_params(pkey)

    # synthetic batched molecular graphs: 2 graphs (cycles with 8 and 6 nodes)
    node_counts = [8, 6]
    srcs, dsts, batch, edge_batch = [], [], [], []
    offset = 0
    for g, n in enumerate(node_counts):
        for i in range(n):
            j = (i + 1) % n
            srcs += [offset + i, offset + j]
            dsts += [offset + j, offset + i]
            edge_batch += [g, g]
        batch += [g] * n
        offset += n
    edge_index = np.array([srcs, dsts], dtype=np.int32)
    E = edge_index.shape[1]

    # directed line graph (no immediate back-tracking, DMPNN convention)
    lg_src, lg_dst = [], []
    for i in range(E):
        for j in range(E):
            if edge_index[1, i] == edge_index[0, j] and not (
                    edge_index[0, i] == edge_index[1, j]
                    and edge_index[1, i] == edge_index[0, j]):
                lg_src.append(i)
                lg_dst.append(j)
    lg_edge_index = np.array([lg_src, lg_dst], dtype=np.int32)

    k1, k2, k3 = jax.random.split(dkey, 3)
    graphs = dict(
        x=jax.random.normal(k1, (sum(node_counts), 64), jnp.float32),
        edge_index=jnp.asarray(edge_index),
        edge_attr=jax.random.normal(k2, (E, 6), jnp.float32),
        lg_edge_index=jnp.asarray(lg_edge_index),
        batch=jnp.asarray(np.array(batch, np.int32)),
        edge_batch=jnp.asarray(np.array(edge_batch, np.int32)),
        num_graphs=len(node_counts),
        max_nodes=max(node_counts),
    )
    proteins = jax.random.normal(k3, (2, 8, 64), jnp.float32)

    out = mutual_dta_forward(params, graphs, proteins)
    out = jax.block_until_ready(out)
    assert out.shape == (2, 1) and bool(jnp.all(jnp.isfinite(out)))
    print("KERNEL_OK")
</pallas_src>

<mosaic_0001>
module attributes {stable_mosaic.version = 11 : i64} {
  func.func @_linear_bias_kernel(%arg0: i32, %arg1: memref<14x64xf32, #tpu.memory_space<vmem>>, %arg2: memref<64x128xf32, #tpu.memory_space<vmem>>, %arg3: memref<1x128xf32, #tpu.memory_space<vmem>>, %arg4: memref<14x128xf32, #tpu.memory_space<vmem>>) attributes {dimension_semantics = [#tpu.dimension_semantics<arbitrary>], iteration_bounds = array<i64: 1>, scalar_prefetch = 0 : i64, scratch_operands = 0 : i64, tpu.core_type = #tpu.core_type<tc>, window_params = [{transform_indices = @transform_0, window_bounds = array<i64: 14, 64>}, {pipeline_mode = #tpu.pipeline_mode<synchronous>, transform_indices = @transform_1, window_bounds = array<i64: 64, 128>}, {pipeline_mode = #tpu.pipeline_mode<synchronous>, transform_indices = @transform_2, window_bounds = array<i64: 1, 128>}, {transform_indices = @transform_3, window_bounds = array<i64: 14, 128>}]} {
    %c0 = arith.constant 0 : index
    %c0_0 = arith.constant 0 : index
    %0 = vector.load %arg1[%c0, %c0_0] : memref<14x64xf32, #tpu.memory_space<vmem>>, vector<14x64xf32>
    %c0_1 = arith.constant 0 : index
    %c0_2 = arith.constant 0 : index
    %1 = vector.load %arg2[%c0_1, %c0_2] : memref<64x128xf32, #tpu.memory_space<vmem>>, vector<64x128xf32>
    %cst = arith.constant dense<0.000000e+00> : vector<14x128xf32>
    %2 = tpu.matmul %0, %1, %cst {dimension_numbers = #tpu.dot_dimension_numbers<[1], [0], [0], [1], [0, 0, 1, 1], [], []>} : vector<14x64xf32>, vector<64x128xf32>, vector<14x128xf32> -> vector<14x128xf32>
    %c0_3 = arith.constant 0 : index
    %c0_4 = arith.constant 0 : index
    %3 = vector.load %arg3[%c0_3, %c0_4] : memref<1x128xf32, #tpu.memory_space<vmem>>, vector<1x128xf32>
    %4 = vector.broadcast %3 : vector<1x128xf32> to vector<14x128xf32>
    %5 = arith.addf %2, %4 : vector<14x128xf32>
    %cst_5 = arith.constant 0.000000e+00 : f32
    %6 = vector.broadcast %cst_5 : f32 to vector<14x128xf32>
    %7 = arith.cmpf oge, %5, %6 : vector<14x128xf32>
    %cst_6 = arith.constant 0.00999999977 : f32
    %8 = vector.broadcast %cst_6 : f32 to vector<14x128xf32>
    %9 = arith.mulf %8, %5 : vector<14x128xf32>
    %10 = arith.select %7, %5, %9 : vector<14x128xi1>, vector<14x128xf32>
    %c0_7 = arith.constant 0 : index
    %c0_8 = arith.constant 0 : index
    %11 = vector.load %arg4[%c0_7, %c0_8] : memref<14x128xf32, #tpu.memory_space<vmem>>, vector<14x128xf32>
    tpu.vector_store %arg4[%c0_7, %c0_8], %10 {strides = array<i32>} : memref<14x128xf32, #tpu.memory_space<vmem>>, vector<14x128xf32>,
    return
  }
  func.func @transform_0(%arg0: i32) -> (i32, i32) {
    %c0_i32 = arith.constant 0 : i32
    %c0_i32_0 = arith.constant 0 : i32
    return %arg0, %c0_i32 : i32, i32
  }
  func.func @transform_1(%arg0: i32) -> (i32, i32) {
    %c0_i32 = arith.constant 0 : i32
    %c0_i32_0 = arith.constant 0 : i32
    %c0_i32_1 = arith.constant 0 : i32
    return %c0_i32, %c0_i32_0 : i32, i32
  }
  func.func @transform_2(%arg0: i32) -> (i32, i32) {
    %c0_i32 = arith.constant 0 : i32
    %c0_i32_0 = arith.constant 0 : i32
    %c0_i32_1 = arith.constant 0 : i32
    return %c0_i32, %c0_i32_0 : i32, i32
  }
  func.func @transform_3(%arg0: i32) -> (i32, i32) {
    %c0_i32 = arith.constant 0 : i32
    %c0_i32_0 = arith.constant 0 : i32
    return %arg0, %c0_i32 : i32, i32
  }
}

</mosaic_0001>

<llo_original>
// kernel: tpu_custom_call.1
$region0: #{tpu_custom_call.1}
  #allocation0 [shape = 'u32[]', space=smem, size = 0x4, offset = 0x4, fixed_abs, tag = 'smem constant byte address 0x4 - core index']
  #allocation1 [shape = 'u32[144,128]{1,0:T(1,128)}', space=vmem, size = 0x12000, scoped, tag = 'internal scratch']
  %s0 = inlined_call_operand.hbm [shape: f32[14,64], index: 0, kind: input, shape index: {}]
  %s1 = inlined_call_operand.hbm [shape: f32[64,128], index: 1, kind: input, shape index: {}]
  %s2 = inlined_call_operand.vmem [shape: f32[1,128], index: 2, kind: input, shape index: {}]
  %s3 = inlined_call_operand.hbm [shape: f32[14,128], index: 3, kind: output, shape index: {}]
  %s4 = sld [smem:[#allocation0]]
  $region30: #{tpu_custom_call.1} parent=0
    _
  %s6 = ssub.s32 1, %s4
  %s7 = scalar_select 0, %s6, %s4
  $region1: #{tpu_custom_call.1} parent=0
    #allocation2 [shape = 'u8[8192]{0}', space=vmem, size = 0x2000, scoped, tag = 'input window, operand 0, single buffered']
    #allocation3 [shape = 's32[1]{0}', space=sflag, size = 0x4, scoped, tag = 'scoped memory for tpu_custom_call.1']
    #allocation4 [shape = 's32[1]{0}', space=sflag, size = 0x4, scoped, tag = 'scoped memory for tpu_custom_call.1']
    #allocation5 [shape = 'u8[32768]{0}', space=vmem, size = 0x8000, scoped, tag = 'input window, operand 1, single buffered']
    #allocation6 [shape = 's32[1]{0}', space=sflag, size = 0x4, scoped, tag = 'scoped memory for tpu_custom_call.1']
    #allocation7 [shape = 'u8[8192]{0}', space=vmem, size = 0x2000, scoped, tag = 'output window, operand 0, single buffered']
    %8 = vsyncpa [#allocation3], 0
    %9 = vsyncpa [#allocation6], 0
    %10 = vsyncpa [#allocation4], 0
    // Predicated region
    $region2: #{tpu_custom_call.1} parent=1 // pred_check
      _
    $region3: #{tpu_custom_call.1} parent=1 // pred_check_branch
      %12 = sbr.rel (0) target = $region5
    $region4: #{tpu_custom_call.1} parent=1 // pred_region
      %s14 = ssub.s32 256, 256
      %15 = vsyncadd [#allocation3], %s14
      %s16 = sshll.u32 [#allocation2], 4
      %s17 = int_to_ptr.vmem [resolvable:$true] %s16
      %22 = dma.hbm_to_vmem [thread:$0]  %s0, 256, %s17, [#allocation3], 128, 128, 8
    $region5: #{tpu_custom_call.1} parent=1 // pred_fallthru
      _
    // Predicated region
    $region6: #{tpu_custom_call.1} parent=1 // pred_check
      _
    $region7: #{tpu_custom_call.1} parent=1 // pred_check_branch
      %24 = sbr.rel (0) target = $region9
    $region8: #{tpu_custom_call.1} parent=1 // pred_region
      %s26 = ssub.s32 1024, 1024
      %27 = vsyncadd [#allocation6], %s26
      %s28 = sshll.u32 [#allocation5], 4
      %s29 = int_to_ptr.vmem [resolvable:$true] %s28
      %34 = dma.hbm_to_vmem [thread:$0]  %s1, 1024, %s29, [#allocation6], 128, 128, 8
    $region9: #{tpu_custom_call.1} parent=1 // pred_fallthru
      _
    // Predicated region
    $region10: #{tpu_custom_call.1} parent=1 // pred_check
      _
    $region11: #{tpu_custom_call.1} parent=1 // pred_check_branch
      %36 = sbr.rel (0) target = $region13
    $region12: #{tpu_custom_call.1} parent=1 // pred_region
      _
    $region13: #{tpu_custom_call.1} parent=1 // pred_fallthru
      _
    // Predicated region
    $region14: #{tpu_custom_call.1} parent=1 // pred_check
      _
    $region15: #{tpu_custom_call.1} parent=1 // pred_check_branch
      %38 = sbr.rel (0) target = $region17
    $region16: #{tpu_custom_call.1} parent=1 // pred_region
      %39 = dma.done [#allocation3], 256
    $region17: #{tpu_custom_call.1} parent=1 // pred_fallthru
      _
    // Predicated region
    $region18: #{tpu_custom_call.1} parent=1 // pred_check
      _
    $region19: #{tpu_custom_call.1} parent=1 // pred_check_branch
      %41 = sbr.rel (0) target = $region21
    $region20: #{tpu_custom_call.1} parent=1 // pred_region
      %42 = dma.done [#allocation6], 1024
    $region21: #{tpu_custom_call.1} parent=1 // pred_fallthru
      _
    %v43 = vld [vmem:[#allocation2] sm:$0xff]
    %v44 = vld [vmem:[#allocation2 + $0x8] sm:$0x3f]
    %v45 = vld [vmem:[#allocation5] sm:$0xff]
    %v46 = vld [vmem:[#allocation5 + $0x8] sm:$0xff]
    %v47 = vld [vmem:[#allocation5 + $0x10] sm:$0xff]
    %v48 = vld [vmem:[#allocation5 + $0x18] sm:$0xff]
    %v49 = vld [vmem:[#allocation5 + $0x20] sm:$0xff]
    %v50 = vld [vmem:[#allocation5 + $0x28] sm:$0xff]
    %v51 = vld [vmem:[#allocation5 + $0x30] sm:$0xff]
    %v52 = vld [vmem:[#allocation5 + $0x38] sm:$0xff]
    %v53 = vld [vmem:[%s2] sm:$0x1]
    %v55 = vlaneseq
    %v56 = vshrl.u32 %v55, 7
    %v57 = vsub.s32 0, %v56
    %v58 = vrot.slane %v53, %v57
    %vm60 = vcmask 523264
    %v62 = vsel %vm60, %v43, 0
    %v65 = vsel %vm60, %v44, 0
    %67 = vmatprep.subr.mxu0 0.0
    %68 = vmatpush1.msra.mxu0 %v45
    %69 = vmatprep.subr.mxu0 0.0
    %70 = vmatpush1.msra.mxu0 %v46
    %71 = vmatprep.subr.mxu0 0.0
    %72 = vmatpush1.msra.mxu0 %v47
    %73 = vmatprep.subr.mxu0 0.0
    %74 = vmatpush1.msra.mxu0 %v48
    %75 = vmatprep.subr.mxu0 0.0
    %76 = vmatpush1.msra.mxu0 %v49
    %77 = vmatprep.subr.mxu0 0.0
    %78 = vmatpush1.msra.mxu0 %v50
    %79 = vmatprep.subr.mxu0 0.0
    %80 = vmatpush1.msra.mxu0 %v51
    %81 = vmatprep.subr.mxu0 0.0
    %82 = vmatpush1.msra.mxu0 %v52
    %83 = vmatprep.subr.mxu0 0.0
    %84 = vmatpush1.msra.mxu0 0.0
    %85 = vmatprep.subr.mxu0 0.0
    %86 = vmatpush1.msra.mxu0 0.0
    %87 = vmatprep.subr.mxu0 0.0
    %88 = vmatpush1.msra.mxu0 0.0
    %89 = vmatprep.subr.mxu0 0.0
    %90 = vmatpush1.msra.mxu0 0.0
    %91 = vmatprep.subr.mxu0 0.0
    %92 = vmatpush1.msra.mxu0 0.0
    %93 = vmatprep.subr.mxu0 0.0
    %94 = vmatpush1.msra.mxu0 0.0
    %95 = vmatprep.subr.mxu0 0.0
    %96 = vmatpush1.msra.mxu0 0.0
    %97 = vmatprep.subr.mxu0 0.0
    %98 = vmatpush1.msra.mxu0 0.0
    %99 = vmatprep.subr.mxu0 0.0
    %100 = vmatpush1.msra.mxu0 0.0
    %101 = vmatprep.subr.mxu0 0.0
    %102 = vmatpush1.msra.mxu0 0.0
    %103 = vmatprep.subr.mxu0 0.0
    %104 = vmatpush1.msra.mxu0 0.0
    %105 = vmatprep.subr.mxu0 0.0
    %106 = vmatpush1.msra.mxu0 0.0
    %107 = vmatprep.subr.mxu0 0.0
    %108 = vmatpush1.msra.mxu0 0.0
    %109 = vmatprep.subr.mxu0 0.0
    %110 = vmatpush1.msra.mxu0 0.0
    %111 = vmatprep.subr.mxu0 0.0
    %112 = vmatpush1.msra.mxu0 0.0
    %113 = vmatprep.subr.mxu0 0.0
    %114 = vmatpush1.msra.mxu0 0.0
    %115 = vmatprep.subr.mxu0 0.0
    %116 = vmatpush1.msra.mxu0 0.0
    %117 = vmatprep.subr.mxu0 0.0
    %118 = vmatpush1.msra.mxu0 0.0
    %119 = vmatprep.subr.mxu0 0.0
    %120 = vmatpush1.msra.mxu0 0.0
    %121 = vmatprep.subr.mxu0 0.0
    %122 = vmatpush1.msra.mxu0 0.0
    %123 = vmatprep.subr.mxu0 0.0
    %124 = vmatpush1.msra.mxu0 0.0
    %125 = vmatprep.subr.mxu0 0.0
    %126 = vmatpush1.msra.mxu0 0.0
    %127 = vmatprep.subr.mxu0 0.0
    %128 = vmatpush1.msra.mxu0 0.0
    %129 = vmatprep.subr.mxu0 0.0
    %130 = vmatpush1.msra.mxu0 0.0
    %131 = vmatprep.mubr.f32.mxu0 0.0
    %132 = vmatmul.mubr.f32.gmra.mrb[0].mxu0 %v62
    %v133 = vpop.f32.mrb[0].mxu0
    %v134 = vadd.f32 %v58, %v133
    %v135 = vpop.f32.mrb[0].mxu0
    %136 = vmatprep.mubr.f32.mxu0 0.0
    %137 = vmatmul.mubr.f32.gmra.mrb[0].mxu0 %v65
    %v138 = vpop.f32.mrb[0].mxu0
    %v139 = vadd.f32 %v58, %v138
    %v140 = vpop.f32.mrb[0].mxu0
    %141 = vdwg.mxu0
    %vm142 = vcmp.ge.f32.partialorder %v134, 0.0
    %vm143 = vcmp.ge.f32.partialorder %v139, 0.0
    %v144 = vmul.f32 %v134, 0.01
    %v145 = vmul.f32 %v139, 0.01
    %v146 = vsel %vm142, %v134, %v144
    %v147 = vsel %vm143, %v139, %v145
    %148 = vst [vmem:[#allocation7] sm:$0xff] %v146
    %149 = vst [vmem:[#allocation7 + $0x8] sm:$0x3f] %v147
    // Predicated region
    $region22: #{tpu_custom_call.1} parent=1 // pred_check
      _
    $region23: #{tpu_custom_call.1} parent=1 // pred_check_branch
      %151 = sbr.rel (0) target = $region25
    $region24: #{tpu_custom_call.1} parent=1 // pred_region
      %s153 = ssub.s32 256, 256
      %154 = vsyncadd [#allocation4], %s153
      %s155 = sshll.u32 [#allocation7], 4
      %s156 = int_to_ptr.vmem [resolvable:$true] %s155
      %161 = dma.vmem_to_hbm [thread:$0]  %s156, 256, %s3, [#allocation4], 128, 128, 8
    $region25: #{tpu_custom_call.1} parent=1 // pred_fallthru
      _
    // Predicated region
    $region26: #{tpu_custom_call.1} parent=1 // pred_check
      _
    $region27: #{tpu_custom_call.1} parent=1 // pred_check_branch
      %163 = sbr.rel (0) target = $region29
    $region28: #{tpu_custom_call.1} parent=1 // pred_region
      %164 = dma.done [#allocation4], 256
    $region29: #{tpu_custom_call.1} parent=1 // pred_fallthru
      _
    %165 = vsyncpa [#allocation3], 1
    %166 = vsyncpa [#allocation6], 1
    %167 = vsyncpa [#allocation4], 1

</llo_original>
